<compile_context>
chip_gen: v6e
topology: v6e:2x2x1
jax: 0.10.0
libtpu: 0.0.40
codegen_flags: <defaults>
</compile_context>

<pallas_src>
import functools

import jax
import jax.numpy as jnp
from jax.experimental import pallas as pl
from jax.experimental.pallas import tpu as pltpu


def _elu(v):
    # ELU, alpha=1.0 (matches torch.nn.ELU default); `where` selects, no NaN.
    return jnp.where(v > 0, v, jnp.exp(v) - 1.0)


def _round_up(n, m):
    return (n + m - 1) // m * m


def scinet_kernel(x_ref, qe_ref,
                  we1_ref, we2_ref, we3_ref,
                  wd1z_ref, wd1q_ref, wd2_ref,
                  whcat_ref, bh_ref,
                  packed_ref):
    f32 = jnp.float32
    mmdt = we1_ref.dtype                 # matmul operand dtype (bf16)
    n_latent = we3_ref.shape[1] // 2     # static

    # ---- encoder: Linear -> ELU -> Linear -> ELU (bias-free); MXU bf16, f32 acc
    h = _elu(jnp.dot(x_ref[...], we1_ref[...], preferred_element_type=f32))
    h = _elu(jnp.dot(h.astype(mmdt), we2_ref[...], preferred_element_type=f32))
    h_c = h.astype(mmdt)

    # ---- fused latent stats: one MXU push, N = 2*n_latent, then lane-split
    dist = jnp.dot(h_c, we3_ref[...], preferred_element_type=f32)
    mu = dist[:, :n_latent]
    sigma = dist[:, n_latent:]

    # ---- packed activation slab: [eps | q] (single narrow DMA, lane-split here)
    qe = qe_ref[...]
    eps = qe[:, :n_latent]
    q = qe[:, n_latent:]

    # ---- reparameterization (f32 VPU math): z = mu + eps * exp(0.5 * logsigma)
    z = mu + eps * jnp.exp(0.5 * sigma)

    # ---- decoder layer 1: cat((z, q)) @ Wd1 == z @ Wd1z + q (*) Wd1q
    # (the K=1 question contribution is a VPU broadcast multiply, not an MXU op;
    #  wrapper asserts q_dim == 1, matching the module's q.reshape(-1, 1) path)
    d = jnp.dot(z.astype(mmdt), wd1z_ref[...], preferred_element_type=f32)
    d = _elu(d + q * wd1q_ref[...])
    d = _elu(jnp.dot(d.astype(mmdt), wd2_ref[...], preferred_element_type=f32))

    # ---- fused lane-dense head: [out | mu | sigma | 0] = [d | h] @ [Wd3 ; We3] + b
    # (32+32 lane concat of vreg-resident bf16 data; one K=64 MXU push total)
    dh = jnp.concatenate([d.astype(mmdt), h_c], axis=-1)
    packed = jnp.dot(dh, whcat_ref[...], preferred_element_type=f32) + bh_ref[...]
    packed_ref[...] = packed.astype(packed_ref.dtype)   # bf16 store (half the HBM writeback)


@functools.partial(jax.jit, static_argnames=("n_latent",))
def scinet_forward(x, q, eps, params, n_latent):
    """Pallas-backed SciNet.forward (output=0 path). Returns (out, mu, sigma)."""
    (we1, we2, we3, wd1, wd2, wd3, bd3) = params
    batch, obs = x.shape
    eh2 = we2.shape[1]
    dh2 = wd2.shape[1]
    out_size = wd3.shape[1]
    q_dim = wd1.shape[0] - n_latent
    # The q broadcast-multiply rewrite assumes exactly one question column.
    assert q_dim == 1, "kernel requires decoder_input == n_latent + 1 (single question column)"

    # PyTorch's "try: q.shape[1] except: q = q.reshape(-1, 1)" glue:
    if q.ndim == 1:
        q = q.reshape(-1, 1)
    q = q.astype(jnp.float32)
    eps = eps.astype(jnp.float32)
    qe = jnp.concatenate([eps, q], axis=-1)            # [batch, n_latent + 1] f32 slab

    # ---- host-side weight plumbing (no in-kernel weight slicing/concat)
    wd1z = wd1[:n_latent, :]
    wd1q = wd1[n_latent:, :].astype(jnp.float32)       # [1, decode_h1], VPU operand

    # fused lane-dense head weight: rows = [Wd3 ; We3], cols = [out | mu | sigma | 0-pad]
    head_cols = out_size + 2 * n_latent
    head_w = max(128, _round_up(head_cols, 128))
    wh_cat = (jnp.zeros((dh2 + eh2, head_w), jnp.float32)
              .at[:dh2, :out_size].set(wd3)
              .at[dh2:, out_size:head_cols].set(we3))
    bhead = jnp.zeros((1, head_w), jnp.float32).at[:, :out_size].set(bd3)

    # bf16 MXU operands; q / eps / bias stay f32 (VPU-only)
    bf = jnp.bfloat16
    x_c = x.astype(bf)
    we1c, we2c, we3c = we1.astype(bf), we2.astype(bf), we3.astype(bf)
    wd1zc, wd2c, whcatc = wd1z.astype(bf), wd2.astype(bf), wh_cat.astype(bf)

    # ---- batch tiling: TB up to 1024 (multiple of 16), even grid for v7x's 2 TCs
    MAX_TB = 1024
    if batch <= 8:
        n_tiles = 1
    else:
        n_tiles = max(2, -(-batch // MAX_TB))
        if n_tiles % 2:
            n_tiles += 1                               # even -> balanced across 2 TCs
    TB = _round_up(-(-batch // n_tiles), 16)
    pb = TB * n_tiles
    if pb != batch:
        pad = ((0, pb - batch), (0, 0))
        x_c = jnp.pad(x_c, pad)
        qe = jnp.pad(qe, pad)
    grid = (n_tiles,)

    def batch_spec(minor):
        return pl.BlockSpec((TB, minor), lambda i: (i, 0))

    def resident(a):
        # TODO(synk): pipeline_mode=pl.Buffered(1) would drop the unused second
        # buffer for these constant-index weights; left at the default for
        # lowering robustness (weights are a few KiB each, re-DMA is skipped
        # anyway because the block index never changes).
        return pl.BlockSpec(a.shape, lambda i: (0, 0))

    packed = pl.pallas_call(
        scinet_kernel,
        out_shape=jax.ShapeDtypeStruct((pb, head_w), jnp.bfloat16),
        grid_spec=pltpu.PrefetchScalarGridSpec(
            num_scalar_prefetch=0,
            grid=grid,
            in_specs=[batch_spec(obs), batch_spec(n_latent + 1),
                      resident(we1c), resident(we2c), resident(we3c),
                      resident(wd1zc), resident(wd1q), resident(wd2c),
                      resident(whcatc), resident(bhead)],
            out_specs=pl.BlockSpec((TB, head_w), lambda i: (i, 0)),
        ),
        compiler_params=pltpu.CompilerParams(
            dimension_semantics=("parallel",),
            vmem_limit_bytes=32 * 1024 * 1024),
    )(x_c, qe, we1c, we2c, we3c, wd1zc, wd1q, wd2c, whcatc, bhead)

    out = packed[:batch, :out_size].astype(jnp.float32)
    mu = packed[:batch, out_size:out_size + n_latent].astype(jnp.float32)
    sigma = packed[:batch, out_size + n_latent:head_cols].astype(jnp.float32)
    return out, mu, sigma


def init_params(key, observation_size, encode_h1, encode_h2, n_latent,
                decoder_input, decode_h1, decode_h2, output_size):
    """Deterministic synthetic weights. Each Linear weight stored as [in, out]."""
    ks = jax.random.split(key, 7)

    def w(k, fan_in, fan_out):
        scale = 1.0 / jnp.sqrt(jnp.float32(fan_in))
        return (jax.random.uniform(k, (fan_in, fan_out), jnp.float32,
                                   minval=-1.0, maxval=1.0) * scale)

    we1 = w(ks[0], observation_size, encode_h1)
    we2 = w(ks[1], encode_h1, encode_h2)
    we3 = w(ks[2], encode_h2, 2 * n_latent)
    wd1 = w(ks[3], decoder_input, decode_h1)
    wd2 = w(ks[4], decode_h1, decode_h2)
    wd3 = w(ks[5], decode_h2, output_size)
    bd3 = (jax.random.uniform(ks[6], (output_size,), jnp.float32,
                              minval=-1.0, maxval=1.0)
           / jnp.sqrt(jnp.float32(decode_h2)))
    return (we1, we2, we3, wd1, wd2, wd3, bd3)


def reference_forward(x, q, eps, params, n_latent, mm_dtype=jnp.bfloat16):
    """Pure-JAX reference mirroring the PyTorch forward (bf16 matmul operands,
    f32 accumulation/elementwise — same operating point as the kernel)."""
    (we1, we2, we3, wd1, wd2, wd3, bd3) = params
    if q.ndim == 1:
        q = q.reshape(-1, 1)
    f32 = jnp.float32
    c = lambda a: a.astype(mm_dtype)
    h = _elu(jnp.dot(c(x), c(we1), preferred_element_type=f32))
    h = _elu(jnp.dot(c(h), c(we2), preferred_element_type=f32))
    dist = jnp.dot(c(h), c(we3), preferred_element_type=f32)
    mu, sigma = dist[:, :n_latent], dist[:, n_latent:]
    z = mu + eps * jnp.exp(0.5 * sigma)
    d = (jnp.dot(c(z), c(wd1[:n_latent]), preferred_element_type=f32)
         + q.astype(f32) * wd1[n_latent:].astype(f32))
    d = _elu(d)
    d = _elu(jnp.dot(c(d), c(wd2), preferred_element_type=f32))
    out = jnp.dot(c(d), c(wd3), preferred_element_type=f32) + bd3
    return out, mu, sigma


if __name__ == "__main__":
    # small SciNet config
    observation_size = 16
    encode_h1 = 32
    encode_h2 = 32
    n_latent = 4
    q_dim = 1                        # "question" input, concatenated to z
    decoder_input = n_latent + q_dim
    decode_h1 = 32
    decode_h2 = 32
    output_size = 2
    batch = 8

    root = jax.random.PRNGKey(0)
    k_param, k_x, k_q, k_eps = jax.random.split(root, 4)

    params = init_params(k_param, observation_size, encode_h1, encode_h2,
                         n_latent, decoder_input, decode_h1, decode_h2,
                         output_size)

    x = jax.random.normal(k_x, (batch, observation_size), jnp.float32)
    q = jax.random.normal(k_q, (batch,), jnp.float32)    # 1-D, exercises reshape branch
    # TODO(synk): torch.randn_like eps is generated host-side for determinism;
    # could be moved in-kernel with pltpu.prng_seed/stateful_normal if parity is not required.
    eps = jax.random.normal(k_eps, (batch, n_latent), jnp.float32)

    out, mu, sigma = scinet_forward(x, q, eps, params, n_latent)
    jax.block_until_ready((out, mu, sigma))

    # sanity check against pure-JAX reference (same bf16-operand math, on-TPU).
    # Tolerance covers the kernel's final bf16 packed store (<= 2^-9 relative).
    ref_out, ref_mu, ref_sigma = reference_forward(x, q, eps, params, n_latent)
    assert jnp.allclose(out, ref_out, atol=4e-3, rtol=4e-3)
    assert jnp.allclose(mu, ref_mu, atol=4e-3, rtol=4e-3)
    assert jnp.allclose(sigma, ref_sigma, atol=4e-3, rtol=4e-3)

    print("KERNEL_OK")
</pallas_src>

<mosaic_0001>
module attributes {stable_mosaic.version = 11 : i64} {
  func.func @scinet_kernel(%arg0: i32, %arg1: memref<16x16xbf16, #tpu.memory_space<vmem>>, %arg2: memref<16x5xf32, #tpu.memory_space<vmem>>, %arg3: memref<16x32xbf16, #tpu.memory_space<vmem>>, %arg4: memref<32x32xbf16, #tpu.memory_space<vmem>>, %arg5: memref<32x8xbf16, #tpu.memory_space<vmem>>, %arg6: memref<4x32xbf16, #tpu.memory_space<vmem>>, %arg7: memref<1x32xf32, #tpu.memory_space<vmem>>, %arg8: memref<32x32xbf16, #tpu.memory_space<vmem>>, %arg9: memref<64x128xbf16, #tpu.memory_space<vmem>>, %arg10: memref<1x128xf32, #tpu.memory_space<vmem>>, %arg11: memref<16x128xbf16, #tpu.memory_space<vmem>>) attributes {dimension_semantics = [#tpu.dimension_semantics<parallel>], iteration_bounds = array<i64: 1>, scalar_prefetch = 0 : i64, scratch_operands = 0 : i64, tpu.core_type = #tpu.core_type<tc>, window_params = [{transform_indices = @transform_0, window_bounds = array<i64: 16, 16>}, {transform_indices = @transform_1, window_bounds = array<i64: 16, 5>}, {pipeline_mode = #tpu.pipeline_mode<synchronous>, transform_indices = @transform_2, window_bounds = array<i64: 16, 32>}, {pipeline_mode = #tpu.pipeline_mode<synchronous>, transform_indices = @transform_3, window_bounds = array<i64: 32, 32>}, {pipeline_mode = #tpu.pipeline_mode<synchronous>, transform_indices = @transform_4, window_bounds = array<i64: 32, 8>}, {pipeline_mode = #tpu.pipeline_mode<synchronous>, transform_indices = @transform_5, window_bounds = array<i64: 4, 32>}, {pipeline_mode = #tpu.pipeline_mode<synchronous>, transform_indices = @transform_6, window_bounds = array<i64: 1, 32>}, {pipeline_mode = #tpu.pipeline_mode<synchronous>, transform_indices = @transform_7, window_bounds = array<i64: 32, 32>}, {pipeline_mode = #tpu.pipeline_mode<synchronous>, transform_indices = @transform_8, window_bounds = array<i64: 64, 128>}, {pipeline_mode = #tpu.pipeline_mode<synchronous>, transform_indices = @transform_9, window_bounds = array<i64: 1, 128>}, {transform_indices = @transform_10, window_bounds = array<i64: 16, 128>}]} {
    %c0 = arith.constant 0 : index
    %c0_0 = arith.constant 0 : index
    %0 = vector.load %arg1[%c0, %c0_0] : memref<16x16xbf16, #tpu.memory_space<vmem>>, vector<16x16xbf16>
    %c0_1 = arith.constant 0 : index
    %c0_2 = arith.constant 0 : index
    %1 = vector.load %arg3[%c0_1, %c0_2] : memref<16x32xbf16, #tpu.memory_space<vmem>>, vector<16x32xbf16>
    %cst = arith.constant dense<0.000000e+00> : vector<16x32xf32>
    %2 = tpu.matmul %0, %1, %cst {dimension_numbers = #tpu.dot_dimension_numbers<[1], [0], [0], [1], [0, 0, 1, 1], [], []>} : vector<16x16xbf16>, vector<16x32xbf16>, vector<16x32xf32> -> vector<16x32xf32>
    %cst_3 = arith.constant 0.000000e+00 : f32
    %3 = vector.broadcast %cst_3 : f32 to vector<16x32xf32>
    %4 = arith.cmpf ogt, %2, %3 : vector<16x32xf32>
    %5 = math.exp %2 : vector<16x32xf32>
    %cst_4 = arith.constant 1.000000e+00 : f32
    %6 = vector.broadcast %cst_4 : f32 to vector<16x32xf32>
    %7 = arith.subf %5, %6 : vector<16x32xf32>
    %8 = arith.select %4, %2, %7 : vector<16x32xi1>, vector<16x32xf32>
    %9 = arith.truncf %8 : vector<16x32xf32> to vector<16x32xbf16>
    %c0_5 = arith.constant 0 : index
    %c0_6 = arith.constant 0 : index
    %10 = vector.load %arg4[%c0_5, %c0_6] : memref<32x32xbf16, #tpu.memory_space<vmem>>, vector<32x32xbf16>
    %cst_7 = arith.constant dense<0.000000e+00> : vector<16x32xf32>
    %11 = tpu.matmul %9, %10, %cst_7 {dimension_numbers = #tpu.dot_dimension_numbers<[1], [0], [0], [1], [0, 0, 1, 1], [], []>} : vector<16x32xbf16>, vector<32x32xbf16>, vector<16x32xf32> -> vector<16x32xf32>
    %cst_8 = arith.constant 0.000000e+00 : f32
    %12 = vector.broadcast %cst_8 : f32 to vector<16x32xf32>
    %13 = arith.cmpf ogt, %11, %12 : vector<16x32xf32>
    %14 = math.exp %11 : vector<16x32xf32>
    %cst_9 = arith.constant 1.000000e+00 : f32
    %15 = vector.broadcast %cst_9 : f32 to vector<16x32xf32>
    %16 = arith.subf %14, %15 : vector<16x32xf32>
    %17 = arith.select %13, %11, %16 : vector<16x32xi1>, vector<16x32xf32>
    %18 = arith.truncf %17 : vector<16x32xf32> to vector<16x32xbf16>
    %c0_10 = arith.constant 0 : index
    %c0_11 = arith.constant 0 : index
    %19 = vector.load %arg5[%c0_10, %c0_11] : memref<32x8xbf16, #tpu.memory_space<vmem>>, vector<32x8xbf16>
    %cst_12 = arith.constant dense<0.000000e+00> : vector<16x8xf32>
    %20 = tpu.matmul %18, %19, %cst_12 {dimension_numbers = #tpu.dot_dimension_numbers<[1], [0], [0], [1], [0, 0, 1, 1], [], []>} : vector<16x32xbf16>, vector<32x8xbf16>, vector<16x8xf32> -> vector<16x8xf32>
    %21 = vector.extract_strided_slice %20 {offsets = [0, 0], sizes = [16, 4], strides = [1, 1]} : vector<16x8xf32> to vector<16x4xf32>
    %22 = vector.extract_strided_slice %20 {offsets = [0, 4], sizes = [16, 4], strides = [1, 1]} : vector<16x8xf32> to vector<16x4xf32>
    %c0_13 = arith.constant 0 : index
    %c0_14 = arith.constant 0 : index
    %23 = vector.load %arg2[%c0_13, %c0_14] : memref<16x5xf32, #tpu.memory_space<vmem>>, vector<16x5xf32>
    %24 = vector.extract_strided_slice %23 {offsets = [0, 0], sizes = [16, 4], strides = [1, 1]} : vector<16x5xf32> to vector<16x4xf32>
    %25 = vector.extract_strided_slice %23 {offsets = [0, 4], sizes = [16, 1], strides = [1, 1]} : vector<16x5xf32> to vector<16x1xf32>
    %cst_15 = arith.constant 5.000000e-01 : f32
    %26 = vector.broadcast %cst_15 : f32 to vector<16x4xf32>
    %27 = arith.mulf %26, %22 : vector<16x4xf32>
    %28 = math.exp %27 : vector<16x4xf32>
    %29 = arith.mulf %24, %28 : vector<16x4xf32>
    %30 = arith.addf %21, %29 : vector<16x4xf32>
    %31 = arith.truncf %30 : vector<16x4xf32> to vector<16x4xbf16>
    %c0_16 = arith.constant 0 : index
    %c0_17 = arith.constant 0 : index
    %32 = vector.load %arg6[%c0_16, %c0_17] : memref<4x32xbf16, #tpu.memory_space<vmem>>, vector<4x32xbf16>
    %cst_18 = arith.constant dense<0.000000e+00> : vector<16x32xf32>
    %33 = tpu.matmul %31, %32, %cst_18 {dimension_numbers = #tpu.dot_dimension_numbers<[1], [0], [0], [1], [0, 0, 1, 1], [], []>} : vector<16x4xbf16>, vector<4x32xbf16>, vector<16x32xf32> -> vector<16x32xf32>
    %c0_19 = arith.constant 0 : index
    %c0_20 = arith.constant 0 : index
    %34 = vector.load %arg7[%c0_19, %c0_20] : memref<1x32xf32, #tpu.memory_space<vmem>>, vector<1x32xf32>
    %35 = vector.broadcast %25 : vector<16x1xf32> to vector<16x32xf32>
    %36 = vector.broadcast %34 : vector<1x32xf32> to vector<16x32xf32>
    %37 = arith.mulf %35, %36 : vector<16x32xf32>
    %38 = arith.addf %33, %37 : vector<16x32xf32>
    %cst_21 = arith.constant 0.000000e+00 : f32
    %39 = vector.broadcast %cst_21 : f32 to vector<16x32xf32>
    %40 = arith.cmpf ogt, %38, %39 : vector<16x32xf32>
    %41 = math.exp %38 : vector<16x32xf32>
    %cst_22 = arith.constant 1.000000e+00 : f32
    %42 = vector.broadcast %cst_22 : f32 to vector<16x32xf32>
    %43 = arith.subf %41, %42 : vector<16x32xf32>
    %44 = arith.select %40, %38, %43 : vector<16x32xi1>, vector<16x32xf32>
    %45 = arith.truncf %44 : vector<16x32xf32> to vector<16x32xbf16>
    %c0_23 = arith.constant 0 : index
    %c0_24 = arith.constant 0 : index
    %46 = vector.load %arg8[%c0_23, %c0_24] : memref<32x32xbf16, #tpu.memory_space<vmem>>, vector<32x32xbf16>
    %cst_25 = arith.constant dense<0.000000e+00> : vector<16x32xf32>
    %47 = tpu.matmul %45, %46, %cst_25 {dimension_numbers = #tpu.dot_dimension_numbers<[1], [0], [0], [1], [0, 0, 1, 1], [], []>} : vector<16x32xbf16>, vector<32x32xbf16>, vector<16x32xf32> -> vector<16x32xf32>
    %cst_26 = arith.constant 0.000000e+00 : f32
    %48 = vector.broadcast %cst_26 : f32 to vector<16x32xf32>
    %49 = arith.cmpf ogt, %47, %48 : vector<16x32xf32>
    %50 = math.exp %47 : vector<16x32xf32>
    %cst_27 = arith.constant 1.000000e+00 : f32
    %51 = vector.broadcast %cst_27 : f32 to vector<16x32xf32>
    %52 = arith.subf %50, %51 : vector<16x32xf32>
    %53 = arith.select %49, %47, %52 : vector<16x32xi1>, vector<16x32xf32>
    %54 = arith.truncf %53 : vector<16x32xf32> to vector<16x32xbf16>
    %55 = tpu.concatenate %54, %18 in 1 : vector<16x32xbf16>, vector<16x32xbf16> -> vector<16x64xbf16>
    %c0_28 = arith.constant 0 : index
    %c0_29 = arith.constant 0 : index
    %56 = vector.load %arg9[%c0_28, %c0_29] : memref<64x128xbf16, #tpu.memory_space<vmem>>, vector<64x128xbf16>
    %cst_30 = arith.constant dense<0.000000e+00> : vector<16x128xf32>
    %57 = tpu.matmul %55, %56, %cst_30 {dimension_numbers = #tpu.dot_dimension_numbers<[1], [0], [0], [1], [0, 0, 1, 1], [], []>} : vector<16x64xbf16>, vector<64x128xbf16>, vector<16x128xf32> -> vector<16x128xf32>
    %c0_31 = arith.constant 0 : index
    %c0_32 = arith.constant 0 : index
    %58 = vector.load %arg10[%c0_31, %c0_32] : memref<1x128xf32, #tpu.memory_space<vmem>>, vector<1x128xf32>
    %59 = vector.broadcast %58 : vector<1x128xf32> to vector<16x128xf32>
    %60 = arith.addf %57, %59 : vector<16x128xf32>
    %61 = arith.truncf %60 : vector<16x128xf32> to vector<16x128xbf16>
    %c0_33 = arith.constant 0 : index
    %c0_34 = arith.constant 0 : index
    %62 = vector.load %arg11[%c0_33, %c0_34] : memref<16x128xbf16, #tpu.memory_space<vmem>>, vector<16x128xbf16>
    tpu.vector_store %arg11[%c0_33, %c0_34], %61 {strides = array<i32>} : memref<16x128xbf16, #tpu.memory_space<vmem>>, vector<16x128xbf16>,
    return
  }
  func.func @transform_0(%arg0: i32) -> (i32, i32) {
    %c0_i32 = arith.constant 0 : i32
    %c0_i32_0 = arith.constant 0 : i32
    return %arg0, %c0_i32 : i32, i32
  }
  func.func @transform_1(%arg0: i32) -> (i32, i32) {
    %c0_i32 = arith.constant 0 : i32
    %c0_i32_0 = arith.constant 0 : i32
    return %arg0, %c0_i32 : i32, i32
  }
  func.func @transform_2(%arg0: i32) -> (i32, i32) {
    %c0_i32 = arith.constant 0 : i32
    %c0_i32_0 = arith.constant 0 : i32
    %c0_i32_1 = arith.constant 0 : i32
    return %c0_i32, %c0_i32_0 : i32, i32
  }
  func.func @transform_3(%arg0: i32) -> (i32, i32) {
    %c0_i32 = arith.constant 0 : i32
    %c0_i32_0 = arith.constant 0 : i32
    %c0_i32_1 = arith.constant 0 : i32
    return %c0_i32, %c0_i32_0 : i32, i32
  }
  func.func @transform_4(%arg0: i32) -> (i32, i32) {
    %c0_i32 = arith.constant 0 : i32
    %c0_i32_0 = arith.constant 0 : i32
    %c0_i32_1 = arith.constant 0 : i32
    return %c0_i32, %c0_i32_0 : i32, i32
  }
  func.func @transform_5(%arg0: i32) -> (i32, i32) {
    %c0_i32 = arith.constant 0 : i32
    %c0_i32_0 = arith.constant 0 : i32
    %c0_i32_1 = arith.constant 0 : i32
    return %c0_i32, %c0_i32_0 : i32, i32
  }
  func.func @transform_6(%arg0: i32) -> (i32, i32) {
    %c0_i32 = arith.constant 0 : i32
    %c0_i32_0 = arith.constant 0 : i32
    %c0_i32_1 = arith.constant 0 : i32
    return %c0_i32, %c0_i32_0 : i32, i32
  }
  func.func @transform_7(%arg0: i32) -> (i32, i32) {
    %c0_i32 = arith.constant 0 : i32
    %c0_i32_0 = arith.constant 0 : i32
    %c0_i32_1 = arith.constant 0 : i32
    return %c0_i32, %c0_i32_0 : i32, i32
  }
  func.func @transform_8(%arg0: i32) -> (i32, i32) {
    %c0_i32 = arith.constant 0 : i32
    %c0_i32_0 = arith.constant 0 : i32
    %c0_i32_1 = arith.constant 0 : i32
    return %c0_i32, %c0_i32_0 : i32, i32
  }
  func.func @transform_9(%arg0: i32) -> (i32, i32) {
    %c0_i32 = arith.constant 0 : i32
    %c0_i32_0 = arith.constant 0 : i32
    %c0_i32_1 = arith.constant 0 : i32
    return %c0_i32, %c0_i32_0 : i32, i32
  }
  func.func @transform_10(%arg0: i32) -> (i32, i32) {
    %c0_i32 = arith.constant 0 : i32
    %c0_i32_0 = arith.constant 0 : i32
    return %arg0, %c0_i32 : i32, i32
  }
}

</mosaic_0001>

<llo_original>
// kernel: scinet_forward.1
$region0: #{scinet_forward.1}
  #allocation0 [shape = 'u32[]', space=smem, size = 0x4, offset = 0x4, fixed_abs, tag = 'smem constant byte address 0x4 - core index']
  #allocation1 [shape = 'u32[144,128]{1,0:T(1,128)}', space=vmem, size = 0x12000, scoped, tag = 'internal scratch']
  %s0 = inlined_call_operand.vmem [shape: bf16[16,16], index: 0, kind: input, shape index: {}]
  %s1 = inlined_call_operand.vmem [shape: f32[16,5], index: 1, kind: input, shape index: {}]
  %s2 = inlined_call_operand.vmem [shape: bf16[16,32], index: 2, kind: input, shape index: {}]
  %s3 = inlined_call_operand.vmem [shape: bf16[32,32], index: 3, kind: input, shape index: {}]
  %s4 = inlined_call_operand.vmem [shape: bf16[32,8], index: 4, kind: input, shape index: {}]
  %s5 = inlined_call_operand.vmem [shape: bf16[4,32], index: 5, kind: input, shape index: {}]
  %s6 = inlined_call_operand.vmem [shape: f32[1,32], index: 6, kind: input, shape index: {}]
  %s7 = inlined_call_operand.vmem [shape: bf16[32,32], index: 7, kind: input, shape index: {}]
  %s8 = inlined_call_operand.vmem [shape: bf16[64,128], index: 8, kind: input, shape index: {}]
  %s9 = inlined_call_operand.vmem [shape: f32[1,128], index: 9, kind: input, shape index: {}]
  %s10 = inlined_call_operand.vmem [shape: bf16[16,128], index: 10, kind: output, shape index: {}]
  %s11 = sld [smem:[#allocation0]]
  $region50: #{scinet_forward.1} parent=0
    _
  %s13 = ssub.s32 1, %s11
  %s14 = scalar_select 0, %s13, %s11
  // Predicated region
  $region2: #{scinet_forward.1} parent=0 // pred_check
    _
  $region3: #{scinet_forward.1} parent=0 // pred_check_branch
    %16 = sbr.rel (0) target = $region5
  $region4: #{scinet_forward.1} parent=0 // pred_region
    _
  $region5: #{scinet_forward.1} parent=0 // pred_fallthru
    _
  // Predicated region
  $region6: #{scinet_forward.1} parent=0 // pred_check
    _
  $region7: #{scinet_forward.1} parent=0 // pred_check_branch
    %18 = sbr.rel (0) target = $region9
  $region8: #{scinet_forward.1} parent=0 // pred_region
    _
  $region9: #{scinet_forward.1} parent=0 // pred_fallthru
    _
  // Predicated region
  $region10: #{scinet_forward.1} parent=0 // pred_check
    _
  $region11: #{scinet_forward.1} parent=0 // pred_check_branch
    %20 = sbr.rel (0) target = $region13
  $region12: #{scinet_forward.1} parent=0 // pred_region
    _
  $region13: #{scinet_forward.1} parent=0 // pred_fallthru
    _
  // Predicated region
  $region14: #{scinet_forward.1} parent=0 // pred_check
    _
  $region15: #{scinet_forward.1} parent=0 // pred_check_branch
    %22 = sbr.rel (0) target = $region17
  $region16: #{scinet_forward.1} parent=0 // pred_region
    _
  $region17: #{scinet_forward.1} parent=0 // pred_fallthru
    _
  // Predicated region
  $region18: #{scinet_forward.1} parent=0 // pred_check
    _
  $region19: #{scinet_forward.1} parent=0 // pred_check_branch
    %24 = sbr.rel (0) target = $region21
  $region20: #{scinet_forward.1} parent=0 // pred_region
    _
  $region21: #{scinet_forward.1} parent=0 // pred_fallthru
    _
  // Predicated region
  $region22: #{scinet_forward.1} parent=0 // pred_check
    _
  $region23: #{scinet_forward.1} parent=0 // pred_check_branch
    %26 = sbr.rel (0) target = $region25
  $region24: #{scinet_forward.1} parent=0 // pred_region
    _
  $region25: #{scinet_forward.1} parent=0 // pred_fallthru
    _
  // Predicated region
  $region26: #{scinet_forward.1} parent=0 // pred_check
    _
  $region27: #{scinet_forward.1} parent=0 // pred_check_branch
    %28 = sbr.rel (0) target = $region29
  $region28: #{scinet_forward.1} parent=0 // pred_region
    _
  $region29: #{scinet_forward.1} parent=0 // pred_fallthru
    _
  // Predicated region
  $region30: #{scinet_forward.1} parent=0 // pred_check
    _
  $region31: #{scinet_forward.1} parent=0 // pred_check_branch
    %30 = sbr.rel (0) target = $region33
  $region32: #{scinet_forward.1} parent=0 // pred_region
    _
  $region33: #{scinet_forward.1} parent=0 // pred_fallthru
    _
  // Predicated region
  $region34: #{scinet_forward.1} parent=0 // pred_check
    _
  $region35: #{scinet_forward.1} parent=0 // pred_check_branch
    %32 = sbr.rel (0) target = $region37
  $region36: #{scinet_forward.1} parent=0 // pred_region
    _
  $region37: #{scinet_forward.1} parent=0 // pred_fallthru
    _
  // Predicated region
  $region38: #{scinet_forward.1} parent=0 // pred_check
    _
  $region39: #{scinet_forward.1} parent=0 // pred_check_branch
    %34 = sbr.rel (0) target = $region41
  $region40: #{scinet_forward.1} parent=0 // pred_region
    _
  $region41: #{scinet_forward.1} parent=0 // pred_fallthru
    _
  %v36 = vld [vmem:[%s0] sm:$0xf]
  %v37 = vld [vmem:[%s0 + $0x4] sm:$0xf]
  %v38 = vld [vmem:[%s2] sm:$0xf]
  %v39 = vld [vmem:[%s2 + $0x4] sm:$0xf]
  %v42 = vunpack.c.l.b16 %v36
  %v43 = vunpack.c.l.b16 %v37
  %v44 = vpack.c.b16 %v43, %v42
  %v47 = vunpack.c.l.b16 %v38
  %v48 = vunpack.c.l.b16 %v39
  %v49 = vpack.c.b16 %v48, %v47
  %vm51 = vcmask 130048
  %v53 = vsel %vm51, %v44, 0
  %55 = vmatprep.subr.bf16.mxu0 0
  %56 = vmatpush1.bf16.msra.mxu0 0
  %57 = vmatprep.subr.bf16.mxu0 0
  %58 = vmatpush1.bf16.msra.mxu0 0
  %59 = vmatprep.subr.bf16.mxu0 0
  %60 = vmatpush1.bf16.msra.mxu0 0
  %61 = vmatprep.subr.bf16.mxu0 0
  %62 = vmatpush1.bf16.msra.mxu0 0
  %63 = vmatprep.subr.bf16.mxu0 0
  %64 = vmatpush1.bf16.msra.mxu0 0
  %65 = vmatprep.subr.bf16.mxu0 0
  %66 = vmatpush1.bf16.msra.mxu0 0
  %67 = vmatprep.subr.bf16.mxu0 0
  %68 = vmatpush1.bf16.msra.mxu0 0
  %69 = vmatprep.subr.bf16.mxu0 0
  %70 = vmatpush1.bf16.msra.mxu0 %v49
  %71 = vmatprep.subr.bf16.mxu0 0
  %72 = vmatpush2.bf16.msra.mxu0 0
  %73 = vmatprep.subr.bf16.mxu0 0
  %74 = vmatpush2.bf16.msra.mxu0 0
  %75 = vmatprep.subr.bf16.mxu0 0
  %76 = vmatpush2.bf16.msra.mxu0 0
  %77 = vmatprep.subr.bf16.mxu0 0
  %78 = vmatpush2.bf16.msra.mxu0 0
  %79 = vmatprep.subr.bf16.mxu0 0
  %80 = vmatpush2.bf16.msra.mxu0 0
  %81 = vmatprep.subr.bf16.mxu0 0
  %82 = vmatpush2.bf16.msra.mxu0 0
  %83 = vmatprep.subr.bf16.mxu0 0
  %84 = vmatpush2.bf16.msra.mxu0 0
  %85 = vmatprep.subr.bf16.mxu0 0
  %86 = vmatpush2.bf16.msra.mxu0 0
  %87 = vmatprep.mubr.bf16.mxu0 0
  %88 = vmatmul.mubr.bf16.gmra.mxu0 %v53
  %v89 = vpop.f32.mrf.mxu0
  %v90 = vadd.f32 0.0, %v89
  %v91 = vpop.f32.mrf.mxu0
  %v92 = vpop.f32.mrf.mxu0
  %v93 = vadd.f32 0.0, %v92
  %v94 = vpop.f32.mrf.mxu0
  %95 = vdwg.mxu0
  %vm96 = vcmp.gt.f32.partialorder %v90, 0.0
  %vm97 = vcmp.gt.f32.partialorder %v93, 0.0
  %v98 = vmul.f32 %v90, 1.442695
  %v99 = vpow.pop %v98
  %v100 = vmul.f32 %v93, 1.442695
  %v101 = vpow.pop %v100
  %v102 = vsub.f32 %v99, 1.0
  %v103 = vsub.f32 %v101, 1.0
  %v104 = vsel %vm96, %v90, %v102
  %v105 = vsel %vm97, %v93, %v103
  %v106 = vpack.c.bf16 %v105, %v104
  %v107 = vld [vmem:[%s3] sm:$0xf]
  %v108 = vld [vmem:[%s3 + $0x4] sm:$0xf]
  %v109 = vld [vmem:[%s3 + $0x8] sm:$0xf]
  %v110 = vld [vmem:[%s3 + $0xc] sm:$0xf]
  %v115 = vunpack.c.l.b16 %v107
  %v116 = vunpack.c.l.b16 %v108
  %v117 = vunpack.c.l.b16 %v109
  %v118 = vunpack.c.l.b16 %v110
  %v119 = vpack.c.b16 %v116, %v115
  %v120 = vpack.c.b16 %v118, %v117
  %vm123 = vcmask 261120
  %v125 = vsel %vm123, %v106, 0
  %127 = vmatprep.subr.bf16.mxu0 0
  %128 = vmatpush1.bf16.msra.mxu0 0
  %129 = vmatprep.subr.bf16.mxu0 0
  %130 = vmatpush1.bf16.msra.mxu0 0
  %131 = vmatprep.subr.bf16.mxu0 0
  %132 = vmatpush1.bf16.msra.mxu0 0
  %133 = vmatprep.subr.bf16.mxu0 0
  %134 = vmatpush1.bf16.msra.mxu0 0
  %135 = vmatprep.subr.bf16.mxu0 0
  %136 = vmatpush1.bf16.msra.mxu0 0
  %137 = vmatprep.subr.bf16.mxu0 0
  %138 = vmatpush1.bf16.msra.mxu0 0
  %139 = vmatprep.subr.bf16.mxu0 0
  %140 = vmatpush1.bf16.msra.mxu0 %v120
  %141 = vmatprep.subr.bf16.mxu0 0
  %142 = vmatpush1.bf16.msra.mxu0 %v119
  %143 = vmatprep.subr.bf16.mxu0 0
  %144 = vmatpush2.bf16.msra.mxu0 0
  %145 = vmatprep.subr.bf16.mxu0 0
  %146 = vmatpush2.bf16.msra.mxu0 0
  %147 = vmatprep.subr.bf16.mxu0 0
  %148 = vmatpush2.bf16.msra.mxu0 0
  %149 = vmatprep.subr.bf16.mxu0 0
  %150 = vmatpush2.bf16.msra.mxu0 0
  %151 = vmatprep.subr.bf16.mxu0 0
  %152 = vmatpush2.bf16.msra.mxu0 0
  %153 = vmatprep.subr.bf16.mxu0 0
  %154 = vmatpush2.bf16.msra.mxu0 0
  %155 = vmatprep.subr.bf16.mxu0 0
  %156 = vmatpush2.bf16.msra.mxu0 0
  %157 = vmatprep.subr.bf16.mxu0 0
  %158 = vmatpush2.bf16.msra.mxu0 0
  %159 = vmatprep.mubr.bf16.mxu0 0
  %160 = vmatmul.mubr.bf16.gmra.mxu0 %v125
  %v161 = vpop.f32.mrf.mxu0
  %v162 = vadd.f32 0.0, %v161
  %v163 = vpop.f32.mrf.mxu0
  %v164 = vpop.f32.mrf.mxu0
  %v165 = vadd.f32 0.0, %v164
  %v166 = vpop.f32.mrf.mxu0
  %167 = vdwg.mxu0
  %vm168 = vcmp.gt.f32.partialorder %v162, 0.0
  %vm169 = vcmp.gt.f32.partialorder %v165, 0.0
  %v170 = vmul.f32 %v162, 1.442695
  %v171 = vpow.pop %v170
  %v172 = vmul.f32 %v165, 1.442695
  %v173 = vpow.pop %v172
  %v174 = vsub.f32 %v171, 1.0
  %v175 = vsub.f32 %v173, 1.0
  %v176 = vsel %vm168, %v162, %v174
  %v177 = vsel %vm169, %v165, %v175
  %v178 = vpack.c.bf16 %v177, %v176
  %v179 = vld [vmem:[%s4] sm:$0xf]
  %v180 = vld [vmem:[%s4 + $0x4] sm:$0xf]
  %v181 = vld [vmem:[%s4 + $0x8] sm:$0xf]
  %v182 = vld [vmem:[%s4 + $0xc] sm:$0xf]
  %v187 = vunpack.c.l.b16 %v179
  %v188 = vunpack.c.l.b16 %v180
  %v189 = vunpack.c.l.b16 %v181
  %v190 = vunpack.c.l.b16 %v182
  %v191 = vpack.c.b16 %v188, %v187
  %v192 = vpack.c.b16 %v190, %v189
  %v196 = vsel %vm123, %v178, 0
  %198 = vmatprep.subr.bf16.mxu0 0
  %199 = vmatpush1.bf16.msra.mxu0 0
  %200 = vmatprep.subr.bf16.mxu0 0
  %201 = vmatpush1.bf16.msra.mxu0 0
  %202 = vmatprep.subr.bf16.mxu0 0
  %203 = vmatpush1.bf16.msra.mxu0 0
  %204 = vmatprep.subr.bf16.mxu0 0
  %205 = vmatpush1.bf16.msra.mxu0 0
  %206 = vmatprep.subr.bf16.mxu0 0
  %207 = vmatpush1.bf16.msra.mxu0 0
  %208 = vmatprep.subr.bf16.mxu0 0
  %209 = vmatpush1.bf16.msra.mxu0 0
  %210 = vmatprep.subr.bf16.mxu0 0
  %211 = vmatpush1.bf16.msra.mxu0 %v192
  %212 = vmatprep.subr.bf16.mxu0 0
  %213 = vmatpush1.bf16.msra.mxu0 %v191
  %214 = vmatprep.subr.bf16.mxu0 0
  %215 = vmatpush2.bf16.msra.mxu0 0
  %216 = vmatprep.subr.bf16.mxu0 0
  %217 = vmatpush2.bf16.msra.mxu0 0
  %218 = vmatprep.subr.bf16.mxu0 0
  %219 = vmatpush2.bf16.msra.mxu0 0
  %220 = vmatprep.subr.bf16.mxu0 0
  %221 = vmatpush2.bf16.msra.mxu0 0
  %222 = vmatprep.subr.bf16.mxu0 0
  %223 = vmatpush2.bf16.msra.mxu0 0
  %224 = vmatprep.subr.bf16.mxu0 0
  %225 = vmatpush2.bf16.msra.mxu0 0
  %226 = vmatprep.subr.bf16.mxu0 0
  %227 = vmatpush2.bf16.msra.mxu0 0
  %228 = vmatprep.subr.bf16.mxu0 0
  %229 = vmatpush2.bf16.msra.mxu0 0
  %230 = vmatprep.mubr.bf16.mxu0 0
  %231 = vmatmul.mubr.bf16.gmra.mxu0 %v196
  %v232 = vpop.f32.mrf.mxu0
  %v233 = vadd.f32 0.0, %v232
  %v234 = vpop.f32.mrf.mxu0
  %v235 = vpop.f32.mrf.mxu0
  %v236 = vadd.f32 0.0, %v235
  %v237 = vpop.f32.mrf.mxu0
  %238 = vdwg.mxu0
  %v239 = vld [vmem:[%s1] sm:$0xff]
  %v240 = vld [vmem:[%s1 + $0x8] sm:$0xff]
  %v241 = vmul.f32 %v233, 0.5
  %v242 = vmul.f32 %v236, 0.5
  %v243 = vmul.f32 %v241, 1.442695
  %v244 = vpow.pop %v243
  %v245 = vmul.f32 %v242, 1.442695
  %v246 = vpow.pop %v245
  %249 = vrot.lane.b32.xlu0 %v244, 124
  %v250 = vpop.permute.xlu0 %249
  %251 = vrot.lane.b32.xlu0 %v246, 124
  %v252 = vpop.permute.xlu0 %251
  %v255 = vmul.f32 %v239, %v250
  %v256 = vmul.f32 %v240, %v252
  %v257 = vadd.f32 %v233, %v255
  %v258 = vadd.f32 %v236, %v256
  %v259 = vpack.c.bf16 %v258, %v257
  %v260 = vld [vmem:[%s5] sm:$0x3]
  %v261 = vld [vmem:[%s6] sm:$0x1]
  %263 = vset.pattern.permute.xlu0 4
  %264 = vperm.xlu0 %263, %v239
  %v265 = vpop.permute.xlu0 %264
  %268 = vset.pattern.permute.xlu0 4
  %269 = vperm.xlu0 %268, %v240
  %v270 = vpop.permute.xlu0 %269
  %v273 = vlaneseq
  %v274 = vshrl.u32 %v273, 7
  %v275 = vsub.s32 0, %v274
  %v276 = vrot.slane %v261, %v275
  %v278 = vmul.f32 %v265, %v276
  %v279 = vmul.f32 %v270, %v276
  %vm280 = vcmask 31744
  %v282 = vsel %vm280, %v259, 0
  %vm284 = vcmask 1041408
  %v286 = vsel %vm284, %v260, 0
  %288 = vmatprep.subr.bf16.mxu0 0
  %289 = vmatpush1.bf16.msra.mxu0 0
  %290 = vmatprep.subr.bf16.mxu0 0
  %291 = vmatpush1.bf16.msra.mxu0 0
  %292 = vmatprep.subr.bf16.mxu0 0
  %293 = vmatpush1.bf16.msra.mxu0 0
  %294 = vmatprep.subr.bf16.mxu0 0
  %295 = vmatpush1.bf16.msra.mxu0 0
  %296 = vmatprep.subr.bf16.mxu0 0
  %297 = vmatpush1.bf16.msra.mxu0 0
  %298 = vmatprep.subr.bf16.mxu0 0
  %299 = vmatpush1.bf16.msra.mxu0 0
  %300 = vmatprep.subr.bf16.mxu0 0
  %301 = vmatpush1.bf16.msra.mxu0 0
  %302 = vmatprep.subr.bf16.mxu0 0
  %303 = vmatpush1.bf16.msra.mxu0 %v286
  %304 = vmatprep.subr.bf16.mxu0 0
  %305 = vmatpush2.bf16.msra.mxu0 0
  %306 = vmatprep.subr.bf16.mxu0 0
  %307 = vmatpush2.bf16.msra.mxu0 0
  %308 = vmatprep.subr.bf16.mxu0 0
  %309 = vmatpush2.bf16.msra.mxu0 0
  %310 = vmatprep.subr.bf16.mxu0 0
  %311 = vmatpush2.bf16.msra.mxu0 0
  %312 = vmatprep.subr.bf16.mxu0 0
  %313 = vmatpush2.bf16.msra.mxu0 0
  %314 = vmatprep.subr.bf16.mxu0 0
  %315 = vmatpush2.bf16.msra.mxu0 0
  %316 = vmatprep.subr.bf16.mxu0 0
  %317 = vmatpush2.bf16.msra.mxu0 0
  %318 = vmatprep.subr.bf16.mxu0 0
  %319 = vmatpush2.bf16.msra.mxu0 0
  %320 = vmatprep.mubr.bf16.mxu0 0
  %321 = vmatmul.mubr.bf16.gmra.mxu0 %v282
  %v322 = vpop.f32.mrf.mxu0
  %v323 = vadd.f32 %v278, %v322
  %v324 = vpop.f32.mrf.mxu0
  %v325 = vpop.f32.mrf.mxu0
  %v326 = vadd.f32 %v279, %v325
  %v327 = vpop.f32.mrf.mxu0
  %328 = vdwg.mxu0
  %vm329 = vcmp.gt.f32.partialorder %v323, 0.0
  %vm330 = vcmp.gt.f32.partialorder %v326, 0.0
  %v331 = vmul.f32 %v323, 1.442695
  %v332 = vpow.pop %v331
  %v333 = vmul.f32 %v326, 1.442695
  %v334 = vpow.pop %v333
  %v335 = vsub.f32 %v332, 1.0
  %v336 = vsub.f32 %v334, 1.0
  %v337 = vsel %vm329, %v323, %v335
  %v338 = vsel %vm330, %v326, %v336
  %v339 = vpack.c.bf16 %v338, %v337
  %v340 = vld [vmem:[%s7] sm:$0xf]
  %v341 = vld [vmem:[%s7 + $0x4] sm:$0xf]
  %v342 = vld [vmem:[%s7 + $0x8] sm:$0xf]
  %v343 = vld [vmem:[%s7 + $0xc] sm:$0xf]
  %v348 = vunpack.c.l.b16 %v340
  %v349 = vunpack.c.l.b16 %v341
  %v350 = vunpack.c.l.b16 %v342
  %v351 = vunpack.c.l.b16 %v343
  %v352 = vpack.c.b16 %v349, %v348
  %v353 = vpack.c.b16 %v351, %v350
  %v357 = vsel %vm123, %v339, 0
  %359 = vmatprep.subr.bf16.mxu0 0
  %360 = vmatpush1.bf16.msra.mxu0 0
  %361 = vmatprep.subr.bf16.mxu0 0
  %362 = vmatpush1.bf16.msra.mxu0 0
  %363 = vmatprep.subr.bf16.mxu0 0
  %364 = vmatpush1.bf16.msra.mxu0 0
  %365 = vmatprep.subr.bf16.mxu0 0
  %366 = vmatpush1.bf16.msra.mxu0 0
  %367 = vmatprep.subr.bf16.mxu0 0
  %368 = vmatpush1.bf16.msra.mxu0 0
  %369 = vmatprep.subr.bf16.mxu0 0
  %370 = vmatpush1.bf16.msra.mxu0 0
  %371 = vmatprep.subr.bf16.mxu0 0
  %372 = vmatpush1.bf16.msra.mxu0 %v353
  %373 = vmatprep.subr.bf16.mxu0 0
  %374 = vmatpush1.bf16.msra.mxu0 %v352
  %375 = vmatprep.subr.bf16.mxu0 0
  %376 = vmatpush2.bf16.msra.mxu0 0
  %377 = vmatprep.subr.bf16.mxu0 0
  %378 = vmatpush2.bf16.msra.mxu0 0
  %379 = vmatprep.subr.bf16.mxu0 0
  %380 = vmatpush2.bf16.msra.mxu0 0
  %381 = vmatprep.subr.bf16.mxu0 0
  %382 = vmatpush2.bf16.msra.mxu0 0
  %383 = vmatprep.subr.bf16.mxu0 0
  %384 = vmatpush2.bf16.msra.mxu0 0
  %385 = vmatprep.subr.bf16.mxu0 0
  %386 = vmatpush2.bf16.msra.mxu0 0
  %387 = vmatprep.subr.bf16.mxu0 0
  %388 = vmatpush2.bf16.msra.mxu0 0
  %389 = vmatprep.subr.bf16.mxu0 0
  %390 = vmatpush2.bf16.msra.mxu0 0
  %391 = vmatprep.mubr.bf16.mxu0 0
  %392 = vmatmul.mubr.bf16.gmra.mxu0 %v357
  %v393 = vpop.f32.mrf.mxu0
  %v394 = vadd.f32 0.0, %v393
  %v395 = vpop.f32.mrf.mxu0
  %v396 = vpop.f32.mrf.mxu0
  %v397 = vadd.f32 0.0, %v396
  %v398 = vpop.f32.mrf.mxu0
  %399 = vdwg.mxu0
  %vm400 = vcmp.gt.f32.partialorder %v394, 0.0
  %vm401 = vcmp.gt.f32.partialorder %v397, 0.0
  %v402 = vmul.f32 %v394, 1.442695
  %v403 = vpow.pop %v402
  %v404 = vmul.f32 %v397, 1.442695
  %v405 = vpow.pop %v404
  %v406 = vsub.f32 %v403, 1.0
  %v407 = vsub.f32 %v405, 1.0
  %v408 = vsel %vm400, %v394, %v406
  %v409 = vsel %vm401, %v397, %v407
  %v410 = vpack.c.bf16 %v409, %v408
  %412 = vrot.lane.b32.xlu0 %v178, 32
  %v413 = vpop.permute.xlu0 %412
  %v416 = vsel %vm123, %v410, %v413
  %v417 = vld [vmem:[%s8] sm:$0xf]
  %v418 = vld [vmem:[%s8 + $0x4] sm:$0xf]
  %v419 = vld [vmem:[%s8 + $0x8] sm:$0xf]
  %v420 = vld [vmem:[%s8 + $0xc] sm:$0xf]
  %v421 = vld [vmem:[%s8 + $0x10] sm:$0xf]
  %v422 = vld [vmem:[%s8 + $0x14] sm:$0xf]
  %v423 = vld [vmem:[%s8 + $0x18] sm:$0xf]
  %v424 = vld [vmem:[%s8 + $0x1c] sm:$0xf]
  %v425 = vld [vmem:[%s9] sm:$0x1]
  %v427 = vlaneseq
  %v428 = vshrl.u32 %v427, 7
  %v429 = vsub.s32 0, %v428
  %v430 = vrot.slane %v425, %v429
  %v440 = vunpack.c.l.b16 %v417
  %v441 = vunpack.c.l.b16 %v418
  %v442 = vunpack.c.l.b16 %v419
  %v443 = vunpack.c.l.b16 %v420
  %v444 = vunpack.c.l.b16 %v421
  %v445 = vunpack.c.l.b16 %v422
  %v446 = vunpack.c.l.b16 %v423
  %v447 = vunpack.c.l.b16 %v424
  %v448 = vpack.c.b16 %v441, %v440
  %v449 = vpack.c.b16 %v443, %v442
  %v450 = vpack.c.b16 %v445, %v444
  %v451 = vpack.c.b16 %v447, %v446
  %vm456 = vcmask 523264
  %v457 = vsel %vm456, %v416, 0
  %459 = vmatprep.subr.bf16.mxu0 0
  %460 = vmatpush1.bf16.msra.mxu0 0
  %461 = vmatprep.subr.bf16.mxu0 0
  %462 = vmatpush1.bf16.msra.mxu0 0
  %463 = vmatprep.subr.bf16.mxu0 0
  %464 = vmatpush1.bf16.msra.mxu0 0
  %465 = vmatprep.subr.bf16.mxu0 0
  %466 = vmatpush1.bf16.msra.mxu0 0
  %467 = vmatprep.subr.bf16.mxu0 0
  %468 = vmatpush1.bf16.msra.mxu0 %v451
  %469 = vmatprep.subr.bf16.mxu0 0
  %470 = vmatpush1.bf16.msra.mxu0 %v450
  %471 = vmatprep.subr.bf16.mxu0 0
  %472 = vmatpush1.bf16.msra.mxu0 %v449
  %473 = vmatprep.subr.bf16.mxu0 0
  %474 = vmatpush1.bf16.msra.mxu0 %v448
  %475 = vmatprep.subr.bf16.mxu0 0
  %476 = vmatpush2.bf16.msra.mxu0 0
  %477 = vmatprep.subr.bf16.mxu0 0
  %478 = vmatpush2.bf16.msra.mxu0 0
  %479 = vmatprep.subr.bf16.mxu0 0
  %480 = vmatpush2.bf16.msra.mxu0 0
  %481 = vmatprep.subr.bf16.mxu0 0
  %482 = vmatpush2.bf16.msra.mxu0 0
  %483 = vmatprep.subr.bf16.mxu0 0
  %484 = vmatpush2.bf16.msra.mxu0 0
  %485 = vmatprep.subr.bf16.mxu0 0
  %486 = vmatpush2.bf16.msra.mxu0 0
  %487 = vmatprep.subr.bf16.mxu0 0
  %488 = vmatpush2.bf16.msra.mxu0 0
  %489 = vmatprep.subr.bf16.mxu0 0
  %490 = vmatpush2.bf16.msra.mxu0 0
  %491 = vmatprep.mubr.bf16.mxu0 0
  %492 = vmatmul.mubr.bf16.gmra.mxu0 %v457
  %v493 = vpop.f32.mrf.mxu0
  %v494 = vadd.f32 %v430, %v493
  %v495 = vpop.f32.mrf.mxu0
  %v496 = vpop.f32.mrf.mxu0
  %v497 = vadd.f32 %v430, %v496
  %v498 = vpop.f32.mrf.mxu0
  %499 = vdwg.mxu0
  %v500 = vpack.c.bf16 %v497, %v494
  %v502 = vunpack.c.l.b16 %v500
  %v503 = vunpack.c.h.b16 %v500
  %v504 = vpack.c.b16 %v502, %v502
  %v505 = vpack.c.b16 %v503, %v503
  %508 = vst [vmem:[%s10] sm:$0xf] %v504
  %509 = vst [vmem:[%s10 + $0x4] sm:$0xf] %v505
  // Predicated region
  $region42: #{scinet_forward.1} parent=0 // pred_check
    _
  $region43: #{scinet_forward.1} parent=0 // pred_check_branch
    %511 = sbr.rel (0) target = $region45
  $region44: #{scinet_forward.1} parent=0 // pred_region
    _
  $region45: #{scinet_forward.1} parent=0 // pred_fallthru
    _
  // Predicated region
  $region46: #{scinet_forward.1} parent=0 // pred_check
    _
  $region47: #{scinet_forward.1} parent=0 // pred_check_branch
    %513 = sbr.rel (0) target = $region49
  $region48: #{scinet_forward.1} parent=0 // pred_region
    _
  $region49: #{scinet_forward.1} parent=0 // pred_fallthru
    _

</llo_original>
